<compile_context>
chip_gen: v5e
topology: v5e:2x2
jax: 0.10.0
libtpu: 0.0.40
codegen_flags: <defaults>
</compile_context>

<pallas_src>
import math

import jax
import jax.numpy as jnp
import numpy as np
from jax import lax
from jax.experimental import pallas as pl
from jax.experimental.pallas import tpu as pltpu  # noqa: F401  (kept for TPU-specific tweaks)

# ----- params (mirror of the `params` global used by the PyTorch code) -----
NUM_INPUTS = 3
MAX_PROGRAM_LEN = 4
STATE_LEN = NUM_INPUTS + 1 + MAX_PROGRAM_LEN          # 8  (seq len S)
DENSE_OUTPUT_SIZE = 32                                # emb / hidden size D
NUM_VARIABLE_HEAD = 3                                 # H pointer heads
NUM_INCOMPLETE_STATEMENTS = 9
NUM_OPERATORS = NUM_INCOMPLETE_STATEMENTS + 1         # operator_head output size (10)
BATCH = 2

S = STATE_LEN
D = DENSE_OUTPUT_SIZE
H = NUM_VARIABLE_HEAD
INV_SQRT_D = 1.0 / math.sqrt(D)

# Fused projection column layout ([D, NF] weight / [B*S, NF] activation):
#   [0 : NUM_OPERATORS)                   operator-head logits
#   [Q_OFF + h*D : Q_OFF + (h+1)*D)       query projection of head h (pre-scaled by 1/sqrt(D))
#   [K_OFF + h*D : K_OFF + (h+1)*D)       key   projection of head h
Q_OFF = 32
K_OFF = Q_OFF + H * D          # 128
NF = 256                       # fused width, padded to a multiple of 128 (lane-dense)

# Output slab column layout ([B*S, NF]):
#   [0 : NUM_OPERATORS)                   operator logits            (row = b*S + s)
#   [SC_OFF + h*S : SC_OFF + (h+1)*S)     pointer-head h scores      (row = b*S + q, col = k)
SC_OFF = 128


def generate_mask():
    """Same semantics as the PyTorch generate_mask()."""
    mask = jnp.zeros((STATE_LEN, STATE_LEN), jnp.float32)
    mask = mask.at[: NUM_INPUTS + 1, NUM_INPUTS + 1:].set(-jnp.inf)
    tri = jnp.triu(
        jnp.full((MAX_PROGRAM_LEN, MAX_PROGRAM_LEN), -jnp.inf, jnp.float32), k=1
    )
    mask = mask.at[NUM_INPUTS + 1:, NUM_INPUTS + 1:].set(tri)
    return mask


# ----------------------------- Pallas kernel -------------------------------
def pccoder_kernel(x_ref, mask_ref, wf_ref, bf_ref, out_ref):
    x = x_ref[...]                       # [B*S, D]
    mask = mask_ref[...]                 # [S, S]

    # One lane-filled MXU pass: operator head + all query/key projections at once.
    fused = (jnp.dot(x, wf_ref[...], preferred_element_type=jnp.float32)
             + bf_ref[...])              # [B*S, NF]

    # Pointer-head scores.  Q was pre-scaled by 1/sqrt(D), so scores = mask + Q K^T.
    dnums = (((1,), (1,)), ((), ()))     # contract last dims; no explicit transpose.
    head_cols = []
    for h in range(H):
        q = fused[:, Q_OFF + h * D: Q_OFF + (h + 1) * D]     # [B*S, D]
        k = fused[:, K_OFF + h * D: K_OFF + (h + 1) * D]     # [B*S, D]
        per_b = []
        for b in range(BATCH):
            qb = q[b * S:(b + 1) * S, :]                     # [S, D]
            kb = k[b * S:(b + 1) * S, :]                     # [S, D]
            s = mask + lax.dot_general(qb, kb, dnums,
                                       preferred_element_type=jnp.float32)
            per_b.append(s)                                  # [S, S]
        head_cols.append(jnp.concatenate(per_b, axis=0))     # [B*S, S]

    sc = jnp.concatenate(head_cols, axis=1)                  # [B*S, H*S]
    pad = jnp.zeros((BATCH * S, (NF - SC_OFF) - H * S), jnp.float32)
    sc_slab = jnp.concatenate([sc, pad], axis=1)             # [B*S, 128]

    # Single lane-dense store of the whole result slab (no masked partial stores).
    out_ref[...] = jnp.concatenate([fused[:, :SC_OFF], sc_slab], axis=1)


# --------------------------- parameter preparation --------------------------
def fuse_params(w_op, b_op, wq, bq, wk, bk):
    """Concatenate operator/query/key projections into one [D, NF] matrix (+ [1, NF] bias).
    The 1/sqrt(D) score scale is folded into the query projection (exact w.r.t. the
    {0, -inf} mask)."""
    zw_mid = jnp.zeros((D, Q_OFF - NUM_OPERATORS), jnp.float32)
    zw_end = jnp.zeros((D, NF - K_OFF - H * D), jnp.float32)
    w_fused = jnp.concatenate(
        [w_op, zw_mid]
        + [wq[h] * INV_SQRT_D for h in range(H)]
        + [wk[h] for h in range(H)]
        + [zw_end],
        axis=1)                                              # [D, NF]

    zb_mid = jnp.zeros((1, Q_OFF - NUM_OPERATORS), jnp.float32)
    zb_end = jnp.zeros((1, NF - K_OFF - H * D), jnp.float32)
    b_fused = jnp.concatenate(
        [b_op, zb_mid]
        + [bq[h] * INV_SQRT_D for h in range(H)]
        + [bk[h] for h in range(H)]
        + [zb_end],
        axis=1)                                              # [1, NF]
    return w_fused, b_fused


# ------------------------------- forward ------------------------------------
def pccoder_forward(x, mask, w_fused, b_fused):
    """Returns (operator_logits, scores_head0, ..., scores_head{H-1})."""
    # TODO(synk): encoder_gen() is an external, constructor-provided module in the
    # PyTorch code; it is modeled as identity here (x is the encoded sequence).
    B = x.shape[0]
    xf = x.reshape(B * S, D)

    slab = pl.pallas_call(
        pccoder_kernel,
        out_shape=jax.ShapeDtypeStruct((B * S, NF), jnp.float32),
        in_specs=[
            pl.BlockSpec((B * S, D), lambda *_: (0, 0)),
            pl.BlockSpec((S, S), lambda *_: (0, 0)),
            pl.BlockSpec((D, NF), lambda *_: (0, 0)),
            pl.BlockSpec((1, NF), lambda *_: (0, 0)),
        ],
        out_specs=pl.BlockSpec((B * S, NF), lambda *_: (0, 0)),
    )(xf, mask, w_fused, b_fused)

    op = slab[:, :NUM_OPERATORS].reshape(B, S, NUM_OPERATORS)
    scores = tuple(
        slab[:, SC_OFF + h * S: SC_OFF + (h + 1) * S].reshape(B, S, S)
        for h in range(H))
    return (op,) + scores


# --------------------------- pure-JAX reference -----------------------------
def pccoder_reference(x, mask, w_op, b_op, wq, bq, wk, bk):
    op = jnp.einsum("bsd,do->bso", x, w_op) + b_op[0]
    outs = [op]
    for h in range(H):
        q = jnp.einsum("bsd,de->bse", x, wq[h]) + bq[h, 0]
        k = jnp.einsum("bsd,de->bse", x, wk[h]) + bk[h, 0]
        s = (mask[None] + jnp.einsum("bqe,bke->bqk", q, k)) * INV_SQRT_D
        outs.append(s)
    return tuple(outs)


if __name__ == "__main__":
    key = jax.random.PRNGKey(0)
    keys = jax.random.split(key, 8)

    # Deterministic synthetic parameters (Linear weights stored pre-transposed: [in, out]).
    x = jax.random.normal(keys[0], (BATCH, S, D), jnp.float32)
    w_op = 0.1 * jax.random.normal(keys[1], (D, NUM_OPERATORS), jnp.float32)
    b_op = 0.1 * jax.random.normal(keys[2], (1, NUM_OPERATORS), jnp.float32)
    wq = 0.1 * jax.random.normal(keys[3], (H, D, D), jnp.float32)
    bq = 0.1 * jax.random.normal(keys[4], (H, 1, D), jnp.float32)
    wk = 0.1 * jax.random.normal(keys[5], (H, D, D), jnp.float32)
    bk = 0.1 * jax.random.normal(keys[6], (H, 1, D), jnp.float32)

    mask = generate_mask()
    w_fused, b_fused = fuse_params(w_op, b_op, wq, bq, wk, bk)

    outs = pccoder_forward(x, mask, w_fused, b_fused)
    outs = jax.block_until_ready(outs)

    refs = pccoder_reference(x, mask, w_op, b_op, wq, bq, wk, bk)
    for o, r in zip(outs, refs):
        np.testing.assert_allclose(np.asarray(o), np.asarray(r), rtol=1e-5, atol=1e-5)

    print("KERNEL_OK")
</pallas_src>

<mosaic_0001>
module attributes {stable_mosaic.version = 11 : i64} {
  func.func @pccoder_kernel(%arg0: memref<16x32xf32, #tpu.memory_space<vmem>>, %arg1: memref<8x8xf32, #tpu.memory_space<vmem>>, %arg2: memref<32x256xf32, #tpu.memory_space<vmem>>, %arg3: memref<1x256xf32, #tpu.memory_space<vmem>>, %arg4: memref<16x256xf32, #tpu.memory_space<vmem>>) attributes {dimension_semantics = [], scalar_prefetch = 0 : i64, scratch_operands = 0 : i64, tpu.core_type = #tpu.core_type<tc>} {
    %c0 = arith.constant 0 : index
    %c0_0 = arith.constant 0 : index
    %0 = vector.load %arg0[%c0, %c0_0] : memref<16x32xf32, #tpu.memory_space<vmem>>, vector<16x32xf32>
    %c0_1 = arith.constant 0 : index
    %c0_2 = arith.constant 0 : index
    %1 = vector.load %arg1[%c0_1, %c0_2] : memref<8x8xf32, #tpu.memory_space<vmem>>, vector<8x8xf32>
    %c0_3 = arith.constant 0 : index
    %c0_4 = arith.constant 0 : index
    %2 = vector.load %arg2[%c0_3, %c0_4] : memref<32x256xf32, #tpu.memory_space<vmem>>, vector<32x256xf32>
    %cst = arith.constant dense<0.000000e+00> : vector<16x256xf32>
    %3 = tpu.matmul %0, %2, %cst {dimension_numbers = #tpu.dot_dimension_numbers<[1], [0], [0], [1], [0, 0, 1, 1], [], []>} : vector<16x32xf32>, vector<32x256xf32>, vector<16x256xf32> -> vector<16x256xf32>
    %c0_5 = arith.constant 0 : index
    %c0_6 = arith.constant 0 : index
    %4 = vector.load %arg3[%c0_5, %c0_6] : memref<1x256xf32, #tpu.memory_space<vmem>>, vector<1x256xf32>
    %5 = vector.broadcast %4 : vector<1x256xf32> to vector<16x256xf32>
    %6 = arith.addf %3, %5 : vector<16x256xf32>
    %7 = vector.extract_strided_slice %6 {offsets = [0, 32], sizes = [16, 32], strides = [1, 1]} : vector<16x256xf32> to vector<16x32xf32>
    %8 = vector.extract_strided_slice %6 {offsets = [0, 128], sizes = [16, 32], strides = [1, 1]} : vector<16x256xf32> to vector<16x32xf32>
    %9 = vector.extract_strided_slice %7 {offsets = [0, 0], sizes = [8, 32], strides = [1, 1]} : vector<16x32xf32> to vector<8x32xf32>
    %10 = vector.extract_strided_slice %8 {offsets = [0, 0], sizes = [8, 32], strides = [1, 1]} : vector<16x32xf32> to vector<8x32xf32>
    %cst_7 = arith.constant dense<0.000000e+00> : vector<8x8xf32>
    %11 = tpu.matmul %9, %10, %cst_7 {dimension_numbers = #tpu.dot_dimension_numbers<[1], [1], [0], [0], [0, 0, 1, 0], [], []>} : vector<8x32xf32>, vector<8x32xf32>, vector<8x8xf32> -> vector<8x8xf32>
    %12 = arith.addf %1, %11 : vector<8x8xf32>
    %13 = vector.extract_strided_slice %7 {offsets = [8, 0], sizes = [8, 32], strides = [1, 1]} : vector<16x32xf32> to vector<8x32xf32>
    %14 = vector.extract_strided_slice %8 {offsets = [8, 0], sizes = [8, 32], strides = [1, 1]} : vector<16x32xf32> to vector<8x32xf32>
    %cst_8 = arith.constant dense<0.000000e+00> : vector<8x8xf32>
    %15 = tpu.matmul %13, %14, %cst_8 {dimension_numbers = #tpu.dot_dimension_numbers<[1], [1], [0], [0], [0, 0, 1, 0], [], []>} : vector<8x32xf32>, vector<8x32xf32>, vector<8x8xf32> -> vector<8x8xf32>
    %16 = arith.addf %1, %15 : vector<8x8xf32>
    %17 = tpu.concatenate %12, %16 in 0 : vector<8x8xf32>, vector<8x8xf32> -> vector<16x8xf32>
    %18 = vector.extract_strided_slice %6 {offsets = [0, 64], sizes = [16, 32], strides = [1, 1]} : vector<16x256xf32> to vector<16x32xf32>
    %19 = vector.extract_strided_slice %6 {offsets = [0, 160], sizes = [16, 32], strides = [1, 1]} : vector<16x256xf32> to vector<16x32xf32>
    %20 = vector.extract_strided_slice %18 {offsets = [0, 0], sizes = [8, 32], strides = [1, 1]} : vector<16x32xf32> to vector<8x32xf32>
    %21 = vector.extract_strided_slice %19 {offsets = [0, 0], sizes = [8, 32], strides = [1, 1]} : vector<16x32xf32> to vector<8x32xf32>
    %cst_9 = arith.constant dense<0.000000e+00> : vector<8x8xf32>
    %22 = tpu.matmul %20, %21, %cst_9 {dimension_numbers = #tpu.dot_dimension_numbers<[1], [1], [0], [0], [0, 0, 1, 0], [], []>} : vector<8x32xf32>, vector<8x32xf32>, vector<8x8xf32> -> vector<8x8xf32>
    %23 = arith.addf %1, %22 : vector<8x8xf32>
    %24 = vector.extract_strided_slice %18 {offsets = [8, 0], sizes = [8, 32], strides = [1, 1]} : vector<16x32xf32> to vector<8x32xf32>
    %25 = vector.extract_strided_slice %19 {offsets = [8, 0], sizes = [8, 32], strides = [1, 1]} : vector<16x32xf32> to vector<8x32xf32>
    %cst_10 = arith.constant dense<0.000000e+00> : vector<8x8xf32>
    %26 = tpu.matmul %24, %25, %cst_10 {dimension_numbers = #tpu.dot_dimension_numbers<[1], [1], [0], [0], [0, 0, 1, 0], [], []>} : vector<8x32xf32>, vector<8x32xf32>, vector<8x8xf32> -> vector<8x8xf32>
    %27 = arith.addf %1, %26 : vector<8x8xf32>
    %28 = tpu.concatenate %23, %27 in 0 : vector<8x8xf32>, vector<8x8xf32> -> vector<16x8xf32>
    %29 = vector.extract_strided_slice %6 {offsets = [0, 96], sizes = [16, 32], strides = [1, 1]} : vector<16x256xf32> to vector<16x32xf32>
    %30 = vector.extract_strided_slice %6 {offsets = [0, 192], sizes = [16, 32], strides = [1, 1]} : vector<16x256xf32> to vector<16x32xf32>
    %31 = vector.extract_strided_slice %29 {offsets = [0, 0], sizes = [8, 32], strides = [1, 1]} : vector<16x32xf32> to vector<8x32xf32>
    %32 = vector.extract_strided_slice %30 {offsets = [0, 0], sizes = [8, 32], strides = [1, 1]} : vector<16x32xf32> to vector<8x32xf32>
    %cst_11 = arith.constant dense<0.000000e+00> : vector<8x8xf32>
    %33 = tpu.matmul %31, %32, %cst_11 {dimension_numbers = #tpu.dot_dimension_numbers<[1], [1], [0], [0], [0, 0, 1, 0], [], []>} : vector<8x32xf32>, vector<8x32xf32>, vector<8x8xf32> -> vector<8x8xf32>
    %34 = arith.addf %1, %33 : vector<8x8xf32>
    %35 = vector.extract_strided_slice %29 {offsets = [8, 0], sizes = [8, 32], strides = [1, 1]} : vector<16x32xf32> to vector<8x32xf32>
    %36 = vector.extract_strided_slice %30 {offsets = [8, 0], sizes = [8, 32], strides = [1, 1]} : vector<16x32xf32> to vector<8x32xf32>
    %cst_12 = arith.constant dense<0.000000e+00> : vector<8x8xf32>
    %37 = tpu.matmul %35, %36, %cst_12 {dimension_numbers = #tpu.dot_dimension_numbers<[1], [1], [0], [0], [0, 0, 1, 0], [], []>} : vector<8x32xf32>, vector<8x32xf32>, vector<8x8xf32> -> vector<8x8xf32>
    %38 = arith.addf %1, %37 : vector<8x8xf32>
    %39 = tpu.concatenate %34, %38 in 0 : vector<8x8xf32>, vector<8x8xf32> -> vector<16x8xf32>
    %40 = tpu.concatenate %17, %28, %39 in 1 : vector<16x8xf32>, vector<16x8xf32>, vector<16x8xf32> -> vector<16x24xf32>
    %cst_13 = arith.constant 0.000000e+00 : f32
    %41 = vector.broadcast %cst_13 : f32 to vector<16x104xf32>
    %42 = tpu.concatenate %40, %41 in 1 : vector<16x24xf32>, vector<16x104xf32> -> vector<16x128xf32>
    %43 = vector.extract_strided_slice %6 {offsets = [0, 0], sizes = [16, 128], strides = [1, 1]} : vector<16x256xf32> to vector<16x128xf32>
    %44 = tpu.concatenate %43, %42 in 1 : vector<16x128xf32>, vector<16x128xf32> -> vector<16x256xf32>
    %c0_14 = arith.constant 0 : index
    %c0_15 = arith.constant 0 : index
    %45 = vector.load %arg4[%c0_14, %c0_15] : memref<16x256xf32, #tpu.memory_space<vmem>>, vector<16x256xf32>
    tpu.vector_store %arg4[%c0_14, %c0_15], %44 {strides = array<i32>} : memref<16x256xf32, #tpu.memory_space<vmem>>, vector<16x256xf32>,
    return
  }
}

</mosaic_0001>

<llo_original>
// kernel: tpu_custom_call.1
$region0: #{tpu_custom_call.1}
  #allocation0 [shape = 'u32[]', space=smem, size = 0x4, offset = 0x4, fixed_abs, tag = 'smem constant byte address 0x4 - core index']
  #allocation1 [shape = 'u32[72,128]{1,0:T(1,128)}', space=vmem, size = 0x9000, scoped, tag = 'internal scratch']
  %s0 = inlined_call_operand.hbm [shape: f32[16,32], index: 0, kind: input, shape index: {}]
  %s1 = inlined_call_operand.hbm [shape: f32[8,8], index: 1, kind: input, shape index: {}]
  %s2 = inlined_call_operand.hbm [shape: f32[32,256], index: 2, kind: input, shape index: {}]
  %s3 = inlined_call_operand.vmem [shape: f32[1,256], index: 3, kind: input, shape index: {}]
  %s4 = inlined_call_operand.hbm [shape: f32[16,256], index: 4, kind: output, shape index: {}]
  %s5 = sld [smem:[#allocation0]]
  $region38: #{tpu_custom_call.1} parent=0
    _
  %s7 = ssub.s32 1, %s5
  %s8 = scalar_select 0, %s7, %s5
  $region1: #{tpu_custom_call.1} parent=0
    #allocation2 [shape = 'u8[8192]{0}', space=vmem, size = 0x2000, scoped, tag = 'input window, operand 0, single buffered']
    #allocation3 [shape = 's32[1]{0}', space=sflag, size = 0x4, scoped, tag = 'scoped memory for tpu_custom_call.1']
    #allocation4 [shape = 's32[1]{0}', space=sflag, size = 0x4, scoped, tag = 'scoped memory for tpu_custom_call.1']
    #allocation5 [shape = 'u8[4096]{0}', space=vmem, size = 0x1000, scoped, tag = 'input window, operand 1, single buffered']
    #allocation6 [shape = 's32[1]{0}', space=sflag, size = 0x4, scoped, tag = 'scoped memory for tpu_custom_call.1']
    #allocation7 [shape = 'u8[32768]{0}', space=vmem, size = 0x8000, scoped, tag = 'input window, operand 2, single buffered']
    #allocation8 [shape = 'u8[16384]{0}', space=vmem, size = 0x4000, scoped, tag = 'output window, operand 0, single buffered']
    %9 = vsyncpa [#allocation3], 0
    %10 = vsyncpa [#allocation6], 0
    %11 = vsyncpa [#allocation4], 0
    // Predicated region
    $region2: #{tpu_custom_call.1} parent=1 // pred_check
      _
    $region3: #{tpu_custom_call.1} parent=1 // pred_check_branch
      %13 = sbr.rel (0) target = $region5
    $region4: #{tpu_custom_call.1} parent=1 // pred_region
      %15 = vsyncadd [#allocation3], 0
      %s16 = sshll.u32 %s0, 4
      %s17 = int_to_ptr.hbm [resolvable:$true] %s16
      %s18 = sshll.u32 [#allocation2], 4
      %s19 = int_to_ptr.vmem [resolvable:$true] %s18
      %24 = dma.hbm_to_vmem [thread:$0]  %s17, 256, %s19, [#allocation3], 128, 128, 8
    $region5: #{tpu_custom_call.1} parent=1 // pred_fallthru
      _
    // Predicated region
    $region6: #{tpu_custom_call.1} parent=1 // pred_check
      _
    $region7: #{tpu_custom_call.1} parent=1 // pred_check_branch
      %26 = sbr.rel (0) target = $region9
    $region8: #{tpu_custom_call.1} parent=1 // pred_region
      %28 = vsyncadd [#allocation6], 0
      %s30 = sshll.u32 %s1, 4
      %s31 = int_to_ptr.hbm [resolvable:$true] %s30
      %s32 = sshll.u32 [#allocation5], 4
      %s33 = int_to_ptr.vmem [resolvable:$true] %s32
      %35 = dma.hbm_to_vmem [thread:$0]  %s31, 128, %s33, [#allocation6]
    $region9: #{tpu_custom_call.1} parent=1 // pred_fallthru
      _
    // Predicated region
    $region10: #{tpu_custom_call.1} parent=1 // pred_check
      _
    $region11: #{tpu_custom_call.1} parent=1 // pred_check_branch
      %37 = sbr.rel (0) target = $region13
    $region12: #{tpu_custom_call.1} parent=1 // pred_region
      %39 = vsyncadd [#allocation6], 0
      %s40 = sshll.u32 %s2, 4
      %s41 = int_to_ptr.hbm [resolvable:$true] %s40
      %s42 = sshll.u32 [#allocation7], 4
      %s43 = int_to_ptr.vmem [resolvable:$true] %s42
      %48 = dma.hbm_to_vmem [thread:$0]  %s41, 1024, %s43, [#allocation6], 256, 256, 16
    $region13: #{tpu_custom_call.1} parent=1 // pred_fallthru
      _
    // Predicated region
    $region14: #{tpu_custom_call.1} parent=1 // pred_check
      _
    $region15: #{tpu_custom_call.1} parent=1 // pred_check_branch
      %50 = sbr.rel (0) target = $region17
    $region16: #{tpu_custom_call.1} parent=1 // pred_region
      _
    $region17: #{tpu_custom_call.1} parent=1 // pred_fallthru
      _
    // Predicated region
    $region18: #{tpu_custom_call.1} parent=1 // pred_check
      _
    $region19: #{tpu_custom_call.1} parent=1 // pred_check_branch
      %52 = sbr.rel (0) target = $region21
    $region20: #{tpu_custom_call.1} parent=1 // pred_region
      %54 = dma.done [#allocation3], 256
    $region21: #{tpu_custom_call.1} parent=1 // pred_fallthru
      _
    // Predicated region
    $region22: #{tpu_custom_call.1} parent=1 // pred_check
      _
    $region23: #{tpu_custom_call.1} parent=1 // pred_check_branch
      %56 = sbr.rel (0) target = $region25
    $region24: #{tpu_custom_call.1} parent=1 // pred_region
      %58 = dma.done [#allocation6], 128
    $region25: #{tpu_custom_call.1} parent=1 // pred_fallthru
      _
    // Predicated region
    $region26: #{tpu_custom_call.1} parent=1 // pred_check
      _
    $region27: #{tpu_custom_call.1} parent=1 // pred_check_branch
      %60 = sbr.rel (0) target = $region29
    $region28: #{tpu_custom_call.1} parent=1 // pred_region
      %62 = dma.done [#allocation6], 1024
    $region29: #{tpu_custom_call.1} parent=1 // pred_fallthru
      _
    %v63 = vld [vmem:[#allocation2] sm:$0xff]
    %v64 = vld [vmem:[#allocation2 + $0x8] sm:$0xff]
    %v65 = vld [vmem:[#allocation5] sm:$0xff]
    %v66 = vld [vmem:[#allocation7] sm:$0xff]
    %v67 = vld [vmem:[#allocation7 + $0x8] sm:$0xff]
    %v68 = vld [vmem:[#allocation7 + $0x10] sm:$0xff]
    %v69 = vld [vmem:[#allocation7 + $0x18] sm:$0xff]
    %v70 = vld [vmem:[#allocation7 + $0x20] sm:$0xff]
    %v71 = vld [vmem:[#allocation7 + $0x28] sm:$0xff]
    %v72 = vld [vmem:[#allocation7 + $0x30] sm:$0xff]
    %v73 = vld [vmem:[#allocation7 + $0x38] sm:$0xff]
    %v74 = vld [vmem:[%s3] sm:$0x3]
    %v76 = vperm.slane %v74, 0
    %v77 = vperm.slane %v74, 1
    %vm80 = vcmask 261120
    %v82 = vsel %vm80, %v63, 0
    %v85 = vsel %vm80, %v64, 0
    %87 = vmatpush.msra.mxu0 0.0
    %88 = vmatpush.msra.mxu0 0.0
    %89 = vmatpush.msra.mxu0 0.0
    %90 = vmatpush.msra.mxu0 0.0
    %91 = vmatpush.msra.mxu0 0.0
    %92 = vmatpush.msra.mxu0 0.0
    %93 = vmatpush.msra.mxu0 0.0
    %94 = vmatpush.msra.mxu0 0.0
    %95 = vmatpush.msra.mxu0 0.0
    %96 = vmatpush.msra.mxu0 0.0
    %97 = vmatpush.msra.mxu0 0.0
    %98 = vmatpush.msra.mxu0 0.0
    %99 = vmatpush.msra.mxu0 %v72
    %100 = vmatpush.msra.mxu0 %v70
    %101 = vmatpush.msra.mxu0 %v68
    %102 = vmatpush.msra.mxu0 %v66
    %103 = vmatmul.f32.gmra.mxu0 %v82
    %v104 = vpop.f32.mrf.mxu0
    %v105 = vadd.f32 %v76, %v104
    %106 = vmatmul.f32.gmra.mxu0 %v85
    %v107 = vpop.f32.mrf.mxu0
    %v108 = vadd.f32 %v76, %v107
    %109 = vdwg.mxu0
    %110 = vmatpush.msra.mxu0 0.0
    %111 = vmatpush.msra.mxu0 0.0
    %112 = vmatpush.msra.mxu0 0.0
    %113 = vmatpush.msra.mxu0 0.0
    %114 = vmatpush.msra.mxu0 0.0
    %115 = vmatpush.msra.mxu0 0.0
    %116 = vmatpush.msra.mxu0 0.0
    %117 = vmatpush.msra.mxu0 0.0
    %118 = vmatpush.msra.mxu0 0.0
    %119 = vmatpush.msra.mxu0 0.0
    %120 = vmatpush.msra.mxu0 0.0
    %121 = vmatpush.msra.mxu0 0.0
    %122 = vmatpush.msra.mxu0 %v73
    %123 = vmatpush.msra.mxu0 %v71
    %124 = vmatpush.msra.mxu0 %v69
    %125 = vmatpush.msra.mxu0 %v67
    %126 = vmatmul.f32.gmra.mxu0 %v82
    %v127 = vpop.f32.mrf.mxu0
    %v128 = vadd.f32 %v77, %v127
    %129 = vmatmul.f32.gmra.mxu0 %v85
    %v130 = vpop.f32.mrf.mxu0
    %v131 = vadd.f32 %v77, %v130
    %132 = vdwg.mxu0
    %134 = vrot.lane.b32.xlu0 %v105, 96
    %v135 = vpop.permute.xlu0 %134
    %v136 = vsel %vm80, %v135, 0
    %v139 = vsel %vm80, %v128, 0
    %141 = vmatpush.xpose.msra.mxu0 0.0
    %142 = vmatpush.xpose.msra.mxu0 0.0
    %143 = vmatpush.xpose.msra.mxu0 0.0
    %144 = vmatpush.xpose.msra.mxu0 0.0
    %145 = vmatpush.xpose.msra.mxu0 0.0
    %146 = vmatpush.xpose.msra.mxu0 0.0
    %147 = vmatpush.xpose.msra.mxu0 0.0
    %148 = vmatpush.xpose.msra.mxu0 0.0
    %149 = vmatpush.xpose.msra.mxu0 0.0
    %150 = vmatpush.xpose.msra.mxu0 0.0
    %151 = vmatpush.xpose.msra.mxu0 0.0
    %152 = vmatpush.xpose.msra.mxu0 0.0
    %153 = vmatpush.xpose.msra.mxu0 0.0
    %154 = vmatpush.xpose.msra.mxu0 0.0
    %155 = vmatpush.xpose.msra.mxu0 0.0
    %156 = vmatpush.xpose.msra.mxu0 %v139
    %157 = vmatmul.f32.gmra.mxu0 %v136
    %v158 = vpop.f32.mrf.mxu0
    %v159 = vadd.f32 0.0, %v158
    %160 = vdwg.mxu0
    %v161 = vadd.f32 %v65, %v159
    %163 = vrot.lane.b32.xlu0 %v108, 96
    %v164 = vpop.permute.xlu0 %163
    %v165 = vsel %vm80, %v164, 0
    %v168 = vsel %vm80, %v131, 0
    %170 = vmatpush.xpose.msra.mxu0 0.0
    %171 = vmatpush.xpose.msra.mxu0 0.0
    %172 = vmatpush.xpose.msra.mxu0 0.0
    %173 = vmatpush.xpose.msra.mxu0 0.0
    %174 = vmatpush.xpose.msra.mxu0 0.0
    %175 = vmatpush.xpose.msra.mxu0 0.0
    %176 = vmatpush.xpose.msra.mxu0 0.0
    %177 = vmatpush.xpose.msra.mxu0 0.0
    %178 = vmatpush.xpose.msra.mxu0 0.0
    %179 = vmatpush.xpose.msra.mxu0 0.0
    %180 = vmatpush.xpose.msra.mxu0 0.0
    %181 = vmatpush.xpose.msra.mxu0 0.0
    %182 = vmatpush.xpose.msra.mxu0 0.0
    %183 = vmatpush.xpose.msra.mxu0 0.0
    %184 = vmatpush.xpose.msra.mxu0 0.0
    %185 = vmatpush.xpose.msra.mxu0 %v168
    %186 = vmatmul.f32.gmra.mxu0 %v165
    %v187 = vpop.f32.mrf.mxu0
    %v188 = vadd.f32 0.0, %v187
    %189 = vdwg.mxu0
    %v190 = vadd.f32 %v65, %v188
    %191 = vrot.lane.b32.xlu0 %v105, 64
    %v192 = vpop.permute.xlu0 %191
    %193 = vrot.lane.b32.xlu0 %v128, 96
    %v194 = vpop.permute.xlu0 %193
    %v195 = vsel %vm80, %v192, 0
    %v197 = vsel %vm80, %v194, 0
    %199 = vmatpush.xpose.msra.mxu0 0.0
    %200 = vmatpush.xpose.msra.mxu0 0.0
    %201 = vmatpush.xpose.msra.mxu0 0.0
    %202 = vmatpush.xpose.msra.mxu0 0.0
    %203 = vmatpush.xpose.msra.mxu0 0.0
    %204 = vmatpush.xpose.msra.mxu0 0.0
    %205 = vmatpush.xpose.msra.mxu0 0.0
    %206 = vmatpush.xpose.msra.mxu0 0.0
    %207 = vmatpush.xpose.msra.mxu0 0.0
    %208 = vmatpush.xpose.msra.mxu0 0.0
    %209 = vmatpush.xpose.msra.mxu0 0.0
    %210 = vmatpush.xpose.msra.mxu0 0.0
    %211 = vmatpush.xpose.msra.mxu0 0.0
    %212 = vmatpush.xpose.msra.mxu0 0.0
    %213 = vmatpush.xpose.msra.mxu0 0.0
    %214 = vmatpush.xpose.msra.mxu0 %v197
    %215 = vmatmul.f32.gmra.mxu0 %v195
    %v216 = vpop.f32.mrf.mxu0
    %v217 = vadd.f32 0.0, %v216
    %218 = vdwg.mxu0
    %v219 = vadd.f32 %v65, %v217
    %220 = vrot.lane.b32.xlu0 %v108, 64
    %v221 = vpop.permute.xlu0 %220
    %222 = vrot.lane.b32.xlu0 %v131, 96
    %v223 = vpop.permute.xlu0 %222
    %v224 = vsel %vm80, %v221, 0
    %v226 = vsel %vm80, %v223, 0
    %228 = vmatpush.xpose.msra.mxu0 0.0
    %229 = vmatpush.xpose.msra.mxu0 0.0
    %230 = vmatpush.xpose.msra.mxu0 0.0
    %231 = vmatpush.xpose.msra.mxu0 0.0
    %232 = vmatpush.xpose.msra.mxu0 0.0
    %233 = vmatpush.xpose.msra.mxu0 0.0
    %234 = vmatpush.xpose.msra.mxu0 0.0
    %235 = vmatpush.xpose.msra.mxu0 0.0
    %236 = vmatpush.xpose.msra.mxu0 0.0
    %237 = vmatpush.xpose.msra.mxu0 0.0
    %238 = vmatpush.xpose.msra.mxu0 0.0
    %239 = vmatpush.xpose.msra.mxu0 0.0
    %240 = vmatpush.xpose.msra.mxu0 0.0
    %241 = vmatpush.xpose.msra.mxu0 0.0
    %242 = vmatpush.xpose.msra.mxu0 0.0
    %243 = vmatpush.xpose.msra.mxu0 %v226
    %244 = vmatmul.f32.gmra.mxu0 %v224
    %v245 = vpop.f32.mrf.mxu0
    %v246 = vadd.f32 0.0, %v245
    %247 = vdwg.mxu0
    %v248 = vadd.f32 %v65, %v246
    %249 = vrot.lane.b32.xlu0 %v105, 32
    %v250 = vpop.permute.xlu0 %249
    %251 = vrot.lane.b32.xlu0 %v128, 64
    %v252 = vpop.permute.xlu0 %251
    %v253 = vsel %vm80, %v250, 0
    %v255 = vsel %vm80, %v252, 0
    %257 = vmatpush.xpose.msra.mxu0 0.0
    %258 = vmatpush.xpose.msra.mxu0 0.0
    %259 = vmatpush.xpose.msra.mxu0 0.0
    %260 = vmatpush.xpose.msra.mxu0 0.0
    %261 = vmatpush.xpose.msra.mxu0 0.0
    %262 = vmatpush.xpose.msra.mxu0 0.0
    %263 = vmatpush.xpose.msra.mxu0 0.0
    %264 = vmatpush.xpose.msra.mxu0 0.0
    %265 = vmatpush.xpose.msra.mxu0 0.0
    %266 = vmatpush.xpose.msra.mxu0 0.0
    %267 = vmatpush.xpose.msra.mxu0 0.0
    %268 = vmatpush.xpose.msra.mxu0 0.0
    %269 = vmatpush.xpose.msra.mxu0 0.0
    %270 = vmatpush.xpose.msra.mxu0 0.0
    %271 = vmatpush.xpose.msra.mxu0 0.0
    %272 = vmatpush.xpose.msra.mxu0 %v255
    %273 = vmatmul.f32.gmra.mxu0 %v253
    %v274 = vpop.f32.mrf.mxu0
    %v275 = vadd.f32 0.0, %v274
    %276 = vdwg.mxu0
    %v277 = vadd.f32 %v65, %v275
    %278 = vrot.lane.b32.xlu0 %v108, 32
    %v279 = vpop.permute.xlu0 %278
    %280 = vrot.lane.b32.xlu0 %v131, 64
    %v281 = vpop.permute.xlu0 %280
    %v282 = vsel %vm80, %v279, 0
    %v284 = vsel %vm80, %v281, 0
    %286 = vmatpush.xpose.msra.mxu0 0.0
    %287 = vmatpush.xpose.msra.mxu0 0.0
    %288 = vmatpush.xpose.msra.mxu0 0.0
    %289 = vmatpush.xpose.msra.mxu0 0.0
    %290 = vmatpush.xpose.msra.mxu0 0.0
    %291 = vmatpush.xpose.msra.mxu0 0.0
    %292 = vmatpush.xpose.msra.mxu0 0.0
    %293 = vmatpush.xpose.msra.mxu0 0.0
    %294 = vmatpush.xpose.msra.mxu0 0.0
    %295 = vmatpush.xpose.msra.mxu0 0.0
    %296 = vmatpush.xpose.msra.mxu0 0.0
    %297 = vmatpush.xpose.msra.mxu0 0.0
    %298 = vmatpush.xpose.msra.mxu0 0.0
    %299 = vmatpush.xpose.msra.mxu0 0.0
    %300 = vmatpush.xpose.msra.mxu0 0.0
    %301 = vmatpush.xpose.msra.mxu0 %v284
    %302 = vmatmul.f32.gmra.mxu0 %v282
    %v303 = vpop.f32.mrf.mxu0
    %v304 = vadd.f32 0.0, %v303
    %305 = vdwg.mxu0
    %v306 = vadd.f32 %v65, %v304
    %309 = vrot.lane.b32.xlu0 %v219, 8
    %v310 = vpop.permute.xlu0 %309
    %311 = vrot.lane.b32.xlu0 %v248, 8
    %v312 = vpop.permute.xlu0 %311
    %317 = vrot.lane.b32.xlu0 %v277, 16
    %v318 = vpop.permute.xlu0 %317
    %319 = vrot.lane.b32.xlu0 %v306, 16
    %v320 = vpop.permute.xlu0 %319
    %vm323 = vcmask 64512
    %v324 = vsel %vm323, %v161, %v310
    %v325 = vsel %vm323, %v190, %v312
    %vm326 = vcmask 130048
    %v327 = vsel %vm326, %v324, %v318
    %v328 = vsel %vm326, %v325, %v320
    %vm329 = vcmask 195584
    %v330 = vsel %vm329, %v327, 0.0
    %v331 = vsel %vm329, %v328, 0.0
    %332 = vst [vmem:[#allocation8] sm:$0xff] %v105
    %333 = vst [vmem:[#allocation8 + $0x8] sm:$0xff] %v330
    %334 = vst [vmem:[#allocation8 + $0x10] sm:$0xff] %v108
    %335 = vst [vmem:[#allocation8 + $0x18] sm:$0xff] %v331
    // Predicated region
    $region30: #{tpu_custom_call.1} parent=1 // pred_check
      _
    $region31: #{tpu_custom_call.1} parent=1 // pred_check_branch
      %337 = sbr.rel (0) target = $region33
    $region32: #{tpu_custom_call.1} parent=1 // pred_region
      %339 = vsyncadd [#allocation4], 0
      %s340 = sshll.u32 [#allocation8], 4
      %s341 = int_to_ptr.vmem [resolvable:$true] %s340
      %s342 = sshll.u32 %s4, 4
      %s343 = int_to_ptr.hbm [resolvable:$true] %s342
      %348 = dma.vmem_to_hbm [thread:$0]  %s341, 512, %s343, [#allocation4], 256, 256, 16
    $region33: #{tpu_custom_call.1} parent=1 // pred_fallthru
      _
    // Predicated region
    $region34: #{tpu_custom_call.1} parent=1 // pred_check
      _
    $region35: #{tpu_custom_call.1} parent=1 // pred_check_branch
      %350 = sbr.rel (0) target = $region37
    $region36: #{tpu_custom_call.1} parent=1 // pred_region
      %352 = dma.done [#allocation4], 512
    $region37: #{tpu_custom_call.1} parent=1 // pred_fallthru
      _
    %353 = vsyncpa [#allocation3], 1
    %354 = vsyncpa [#allocation6], 1
    %355 = vsyncpa [#allocation4], 1

</llo_original>
